<compile_context>
chip_gen: v7x
topology: tpu7x:2x2x1
jax: 0.10.0
libtpu: 0.0.40
codegen_flags: <defaults>
</compile_context>

<pallas_src>
import math

import jax
import jax.numpy as jnp
from jax.experimental import pallas as pl
from jax.experimental.pallas import tpu as pltpu


# ----------------------------- kernel ---------------------------------------


def _critic_kernel(xu_ref,
                   w1_ref, b1_ref,
                   w2_ref, b2_ref,
                   w5_ref, b5_ref,
                   w3_ref, w6_ref, b3_ref,
                   q_ref):
    """Fused twin-Q MLP on one batch tile. Output column 0 = Q1, column 1 = Q2."""
    cdt = w1_ref.dtype          # MXU input dtype (bf16 by default)
    hidden = w2_ref.shape[0]

    xu = xu_ref[...].astype(cdt)

    # layer 1: single dot against fused [w1 | w4] -> (TB, 2H), f32 accumulate.
    h = jnp.dot(xu, w1_ref[...], preferred_element_type=jnp.float32) + b1_ref[...]
    h = jnp.maximum(h, 0.0)

    # layer 2: un-fused heads (separate (H,H) weights -> no zero-FLOP MXU work).
    g1 = jnp.dot(h[:, :hidden].astype(cdt), w2_ref[...],
                 preferred_element_type=jnp.float32) + b2_ref[...]
    g1 = jnp.maximum(g1, 0.0)
    g2 = jnp.dot(h[:, hidden:].astype(cdt), w5_ref[...],
                 preferred_element_type=jnp.float32) + b5_ref[...]
    g2 = jnp.maximum(g2, 0.0)

    # layer 3: N=1 projections on the VPU/XLU (broadcast multiply + lane reduce)
    # instead of an MXU pass that pads N=1 to a full tile.
    w3 = w3_ref[...].astype(jnp.float32)      # (1, H)
    w6 = w6_ref[...].astype(jnp.float32)      # (1, H)
    q1 = jnp.sum(g1 * w3, axis=-1, keepdims=True) + b3_ref[:, 0:1]   # (TB, 1)
    q2 = jnp.sum(g2 * w6, axis=-1, keepdims=True) + b3_ref[:, 1:2]   # (TB, 1)

    q_ref[:, 0:1] = q1.astype(q_ref.dtype)
    q_ref[:, 1:2] = q2.astype(q_ref.dtype)


# ----------------------------- wrapper ---------------------------------------


def _round_up(x, m):
    return ((x + m - 1) // m) * m


def _choose_batch_tile(batch, batch_tile, hidden):
    """Pick a legal, performant batch tile."""
    # Tiny / ragged batches: one full-extent block (always a legal BlockSpec).
    # For such batches the kernel is launch-overhead bound anyway; a plain XLA
    # path would also be fine here.
    if batch <= 8 or batch % 8 != 0:
        return batch
    tb = min(batch_tile, batch)
    # v7x megacore: keep >= 2 grid steps so the "parallel" batch axis lands on
    # both TensorCores (no cost on single-TC v5e/v6e).
    if batch >= 16:
        tb = min(tb, _round_up(pl.cdiv(batch, 2), 8))
    tb = max(8, (tb // 8) * 8)
    # Keep per-step f32 intermediates (~4 x (tb, H) arrays) well inside VMEM for
    # very large hidden dims (v7x only has 64 MiB physical VMEM).
    while tb > 256 and 4 * tb * hidden * 4 > 32 * 1024 * 1024:
        tb //= 2
    return tb


def _vmem_limit_bytes(tb, in_feat, hidden):
    """Rough VMEM budget: streamed tiles + resident weights + f32 intermediates."""
    f32, wb = 4, 2
    two_h = 2 * hidden
    stream = 2 * tb * in_feat * f32 + 2 * tb * 2 * f32          # double-buffered I/O tiles
    weights = 2 * ((in_feat * two_h + 2 * hidden * hidden + two_h) * wb
                   + (two_h + 2 * hidden + 2) * f32)            # resident (2 bufs each)
    inter = (tb * two_h + 2 * tb * hidden + 2 * tb) * f32       # h, g1, g2, q
    est = stream + weights + inter
    # Generous headroom, never above the smallest physical VMEM (v7x: 64 MiB).
    return int(min(64 * 1024 * 1024, max(32 * 1024 * 1024, 2 * est)))


def critic_forward(state, action, fused, *, batch_tile=1024):
    """Pallas equivalent of Critic.forward(state, action) -> (q1, q2).

    state:  [B, num_inputs]  float32
    action: [B, num_actions] float32
    fused:  dict produced by fuse_critic_params (prepared twin-head weights).
    """
    batch, num_inputs = state.shape
    num_actions = action.shape[1]
    in_feat = num_inputs + num_actions
    hidden = fused["w2"].shape[0]

    # Single wrapper-level concat; the kernel then does one layer-1 dot.
    xu = jnp.concatenate([state, action], axis=1)

    tb = _choose_batch_tile(batch, batch_tile, hidden)
    grid = (pl.cdiv(batch, tb),)

    def _tile_spec(feat):
        # Streams one (tb, feat) activation tile per grid step.
        return pl.BlockSpec((tb, feat), lambda i: (i, 0),
                            memory_space=pltpu.MemorySpace.VMEM)

    def _resident_spec(shape):
        # Same (full-array) block every grid step -> weight stays VMEM-resident.
        ndim = len(shape)
        return pl.BlockSpec(shape, lambda i, _n=ndim: (0,) * _n,
                            memory_space=pltpu.MemorySpace.VMEM)

    weight_args = (fused["w1"], fused["b1"],
                   fused["w2"], fused["b2"],
                   fused["w5"], fused["b5"],
                   fused["w3"], fused["w6"], fused["b3"])

    in_specs = [_tile_spec(in_feat)]
    in_specs += [_resident_spec(w.shape) for w in weight_args]

    # (tb, 2) output tile: lane-sparse but only ~4 KB/step; padding would only
    # inflate HBM writeback (per perf review, leave as-is).
    out_spec = pl.BlockSpec((tb, 2), lambda i: (i, 0),
                            memory_space=pltpu.MemorySpace.VMEM)

    q = pl.pallas_call(
        _critic_kernel,
        out_shape=jax.ShapeDtypeStruct((batch, 2), jnp.float32),
        grid=grid,
        in_specs=in_specs,
        out_specs=out_spec,
        compiler_params=pltpu.CompilerParams(
            dimension_semantics=("parallel",),          # batch grid across TCs (v7x)
            vmem_limit_bytes=_vmem_limit_bytes(tb, in_feat, hidden)),
    )(xu, *weight_args)

    # Cheap [B,1] slices; matches the torch module's (x1, x2) return signature.
    return q[:, 0:1], q[:, 1:2]


# ------------------------- params (init + fusion) ----------------------------


def _xavier_uniform(key, fan_in, fan_out):
    # Matches torch.nn.init.xavier_uniform_ with gain=1.
    limit = math.sqrt(6.0 / (fan_in + fan_out))
    return jax.random.uniform(
        key, (fan_in, fan_out), dtype=jnp.float32, minval=-limit, maxval=limit)


def init_critic_params(key, num_inputs, num_actions, hidden_dim):
    """Per-layer params mirroring weights_init_ (xavier_uniform weights, zero bias).

    Weights stored as [in_features, out_features] (transpose of torch's layout).
    """
    in_dim = num_inputs + num_actions
    dims = [
        (in_dim, hidden_dim),      # linear1
        (hidden_dim, hidden_dim),  # linear2
        (hidden_dim, 1),           # linear3
        (in_dim, hidden_dim),      # linear4
        (hidden_dim, hidden_dim),  # linear5
        (hidden_dim, 1),           # linear6
    ]
    keys = jax.random.split(key, len(dims))
    params = {}
    for i, ((fi, fo), k) in enumerate(zip(dims, keys), start=1):
        params[f"w{i}"] = _xavier_uniform(k, fi, fo)
        params[f"b{i}"] = jnp.zeros((1, fo), dtype=jnp.float32)
    return params


def fuse_critic_params(params, *, weight_dtype=jnp.bfloat16):
    """Prepare kernel weights.  Call ONCE, outside the per-step path.

    layer 1: twin heads fused along N -> (in_dim, 2H)
    layer 2: heads kept separate (no block-diagonal zero padding)
    layer 3: stored as (1, H) row vectors (VPU broadcast-multiply + lane reduce)
    Biases stay f32 (added after the f32-accumulated matmuls).
    """
    return {
        "w1": jnp.concatenate([params["w1"], params["w4"]], axis=1).astype(weight_dtype),
        "b1": jnp.concatenate([params["b1"], params["b4"]], axis=1).astype(jnp.float32),
        "w2": params["w2"].astype(weight_dtype),
        "b2": params["b2"].astype(jnp.float32),
        "w5": params["w5"].astype(weight_dtype),
        "b5": params["b5"].astype(jnp.float32),
        "w3": params["w3"].T.astype(weight_dtype),   # (1, H)
        "w6": params["w6"].T.astype(weight_dtype),   # (1, H)
        "b3": jnp.concatenate([params["b3"], params["b6"]], axis=1).astype(jnp.float32),
    }


# ----------------------------- reference -------------------------------------


def _reference_forward(state, action, params, *, weight_dtype=jnp.bfloat16):
    """Pure-JAX reference mirroring the kernel's numerics (bf16 MXU inputs for
    layers 1-2, f32 activation for the VPU layer-3 projection)."""
    hi = jax.lax.Precision.HIGHEST

    def qc(x):
        return x.astype(weight_dtype).astype(jnp.float32)

    xu = jnp.concatenate([state, action], axis=1)

    h1 = jax.nn.relu(jnp.dot(qc(xu), qc(params["w1"]), precision=hi) + params["b1"])
    h1 = jax.nn.relu(jnp.dot(qc(h1), qc(params["w2"]), precision=hi) + params["b2"])
    q1 = jnp.dot(h1, qc(params["w3"]), precision=hi) + params["b3"]

    h2 = jax.nn.relu(jnp.dot(qc(xu), qc(params["w4"]), precision=hi) + params["b4"])
    h2 = jax.nn.relu(jnp.dot(qc(h2), qc(params["w5"]), precision=hi) + params["b5"])
    q2 = jnp.dot(h2, qc(params["w6"]), precision=hi) + params["b6"]
    return q1, q2


# TODO(synk): save_checkpoint / load_checkpoint are host-side file I/O with no
# Pallas equivalent; omitted.

if __name__ == "__main__":
    num_inputs, num_actions, hidden_dim = 8, 4, 32

    key = jax.random.PRNGKey(0)
    k_params, k_state, k_action = jax.random.split(key, 3)

    params = init_critic_params(k_params, num_inputs, num_actions, hidden_dim)
    fused = fuse_critic_params(params, weight_dtype=jnp.bfloat16)

    # Small-batch case (single full-extent tile).
    batch = 2
    state = jax.random.normal(k_state, (batch, num_inputs), dtype=jnp.float32)
    action = jax.random.normal(k_action, (batch, num_actions), dtype=jnp.float32)

    q1, q2 = critic_forward(state, action, fused)
    jax.block_until_ready((q1, q2))

    q1_ref, q2_ref = _reference_forward(state, action, params)
    assert q1.shape == (batch, 1) and q2.shape == (batch, 1)
    assert jnp.allclose(q1, q1_ref, atol=2e-4, rtol=2e-4)
    assert jnp.allclose(q2, q2_ref, atol=2e-4, rtol=2e-4)

    # Larger batch: exercises the tiled grid (>= 2 steps -> megacore path on v7x).
    batch2 = 64
    k_s2, k_a2 = jax.random.split(jax.random.PRNGKey(1), 2)
    state2 = jax.random.normal(k_s2, (batch2, num_inputs), dtype=jnp.float32)
    action2 = jax.random.normal(k_a2, (batch2, num_actions), dtype=jnp.float32)

    p1, p2 = critic_forward(state2, action2, fused)
    jax.block_until_ready((p1, p2))
    r1, r2 = _reference_forward(state2, action2, params)
    assert jnp.allclose(p1, r1, atol=2e-4, rtol=2e-4)
    assert jnp.allclose(p2, r2, atol=2e-4, rtol=2e-4)

    print("KERNEL_OK")
</pallas_src>

<mosaic_0001>
module attributes {stable_mosaic.version = 11 : i64} {
  func.func @_critic_kernel(%arg0: i32, %arg1: memref<2x12xf32, #tpu.memory_space<vmem>>, %arg2: memref<12x64xbf16, #tpu.memory_space<vmem>>, %arg3: memref<1x64xf32, #tpu.memory_space<vmem>>, %arg4: memref<32x32xbf16, #tpu.memory_space<vmem>>, %arg5: memref<1x32xf32, #tpu.memory_space<vmem>>, %arg6: memref<32x32xbf16, #tpu.memory_space<vmem>>, %arg7: memref<1x32xf32, #tpu.memory_space<vmem>>, %arg8: memref<1x32xbf16, #tpu.memory_space<vmem>>, %arg9: memref<1x32xbf16, #tpu.memory_space<vmem>>, %arg10: memref<1x2xf32, #tpu.memory_space<vmem>>, %arg11: memref<2x2xf32, #tpu.memory_space<vmem>>) attributes {dimension_semantics = [#tpu.dimension_semantics<parallel>], iteration_bounds = array<i64: 1>, scalar_prefetch = 0 : i64, scratch_operands = 0 : i64, tpu.core_type = #tpu.core_type<tc>, window_params = [{transform_indices = @transform_0, window_bounds = array<i64: 2, 12>}, {pipeline_mode = #tpu.pipeline_mode<synchronous>, transform_indices = @transform_1, window_bounds = array<i64: 12, 64>}, {pipeline_mode = #tpu.pipeline_mode<synchronous>, transform_indices = @transform_2, window_bounds = array<i64: 1, 64>}, {pipeline_mode = #tpu.pipeline_mode<synchronous>, transform_indices = @transform_3, window_bounds = array<i64: 32, 32>}, {pipeline_mode = #tpu.pipeline_mode<synchronous>, transform_indices = @transform_4, window_bounds = array<i64: 1, 32>}, {pipeline_mode = #tpu.pipeline_mode<synchronous>, transform_indices = @transform_5, window_bounds = array<i64: 32, 32>}, {pipeline_mode = #tpu.pipeline_mode<synchronous>, transform_indices = @transform_6, window_bounds = array<i64: 1, 32>}, {pipeline_mode = #tpu.pipeline_mode<synchronous>, transform_indices = @transform_7, window_bounds = array<i64: 1, 32>}, {pipeline_mode = #tpu.pipeline_mode<synchronous>, transform_indices = @transform_8, window_bounds = array<i64: 1, 32>}, {pipeline_mode = #tpu.pipeline_mode<synchronous>, transform_indices = @transform_9, window_bounds = array<i64: 1, 2>}, {transform_indices = @transform_10, window_bounds = array<i64: 2, 2>}]} {
    %c0 = arith.constant 0 : index
    %c0_0 = arith.constant 0 : index
    %0 = vector.load %arg1[%c0, %c0_0] : memref<2x12xf32, #tpu.memory_space<vmem>>, vector<2x12xf32>
    %1 = arith.truncf %0 : vector<2x12xf32> to vector<2x12xbf16>
    %c0_1 = arith.constant 0 : index
    %c0_2 = arith.constant 0 : index
    %2 = vector.load %arg2[%c0_1, %c0_2] : memref<12x64xbf16, #tpu.memory_space<vmem>>, vector<12x64xbf16>
    %cst = arith.constant dense<0.000000e+00> : vector<2x64xf32>
    %3 = tpu.matmul %1, %2, %cst {dimension_numbers = #tpu.dot_dimension_numbers<[1], [0], [0], [1], [0, 0, 1, 1], [], []>} : vector<2x12xbf16>, vector<12x64xbf16>, vector<2x64xf32> -> vector<2x64xf32>
    %c0_3 = arith.constant 0 : index
    %c0_4 = arith.constant 0 : index
    %4 = vector.load %arg3[%c0_3, %c0_4] : memref<1x64xf32, #tpu.memory_space<vmem>>, vector<1x64xf32>
    %5 = vector.broadcast %4 : vector<1x64xf32> to vector<2x64xf32>
    %6 = arith.addf %3, %5 : vector<2x64xf32>
    %cst_5 = arith.constant 0.000000e+00 : f32
    %7 = vector.broadcast %cst_5 : f32 to vector<2x64xf32>
    %8 = arith.maximumf %6, %7 : vector<2x64xf32>
    %9 = vector.extract_strided_slice %8 {offsets = [0, 0], sizes = [2, 32], strides = [1, 1]} : vector<2x64xf32> to vector<2x32xf32>
    %10 = arith.truncf %9 : vector<2x32xf32> to vector<2x32xbf16>
    %c0_6 = arith.constant 0 : index
    %c0_7 = arith.constant 0 : index
    %11 = vector.load %arg4[%c0_6, %c0_7] : memref<32x32xbf16, #tpu.memory_space<vmem>>, vector<32x32xbf16>
    %cst_8 = arith.constant dense<0.000000e+00> : vector<2x32xf32>
    %12 = tpu.matmul %10, %11, %cst_8 {dimension_numbers = #tpu.dot_dimension_numbers<[1], [0], [0], [1], [0, 0, 1, 1], [], []>} : vector<2x32xbf16>, vector<32x32xbf16>, vector<2x32xf32> -> vector<2x32xf32>
    %c0_9 = arith.constant 0 : index
    %c0_10 = arith.constant 0 : index
    %13 = vector.load %arg5[%c0_9, %c0_10] : memref<1x32xf32, #tpu.memory_space<vmem>>, vector<1x32xf32>
    %14 = vector.broadcast %13 : vector<1x32xf32> to vector<2x32xf32>
    %15 = arith.addf %12, %14 : vector<2x32xf32>
    %cst_11 = arith.constant 0.000000e+00 : f32
    %16 = vector.broadcast %cst_11 : f32 to vector<2x32xf32>
    %17 = arith.maximumf %15, %16 : vector<2x32xf32>
    %18 = vector.extract_strided_slice %8 {offsets = [0, 32], sizes = [2, 32], strides = [1, 1]} : vector<2x64xf32> to vector<2x32xf32>
    %19 = arith.truncf %18 : vector<2x32xf32> to vector<2x32xbf16>
    %c0_12 = arith.constant 0 : index
    %c0_13 = arith.constant 0 : index
    %20 = vector.load %arg6[%c0_12, %c0_13] : memref<32x32xbf16, #tpu.memory_space<vmem>>, vector<32x32xbf16>
    %cst_14 = arith.constant dense<0.000000e+00> : vector<2x32xf32>
    %21 = tpu.matmul %19, %20, %cst_14 {dimension_numbers = #tpu.dot_dimension_numbers<[1], [0], [0], [1], [0, 0, 1, 1], [], []>} : vector<2x32xbf16>, vector<32x32xbf16>, vector<2x32xf32> -> vector<2x32xf32>
    %c0_15 = arith.constant 0 : index
    %c0_16 = arith.constant 0 : index
    %22 = vector.load %arg7[%c0_15, %c0_16] : memref<1x32xf32, #tpu.memory_space<vmem>>, vector<1x32xf32>
    %23 = vector.broadcast %22 : vector<1x32xf32> to vector<2x32xf32>
    %24 = arith.addf %21, %23 : vector<2x32xf32>
    %cst_17 = arith.constant 0.000000e+00 : f32
    %25 = vector.broadcast %cst_17 : f32 to vector<2x32xf32>
    %26 = arith.maximumf %24, %25 : vector<2x32xf32>
    %c0_18 = arith.constant 0 : index
    %c0_19 = arith.constant 0 : index
    %27 = vector.load %arg8[%c0_18, %c0_19] : memref<1x32xbf16, #tpu.memory_space<vmem>>, vector<1x32xbf16>
    %28 = arith.extf %27 : vector<1x32xbf16> to vector<1x32xf32>
    %c0_20 = arith.constant 0 : index
    %c0_21 = arith.constant 0 : index
    %29 = vector.load %arg9[%c0_20, %c0_21] : memref<1x32xbf16, #tpu.memory_space<vmem>>, vector<1x32xbf16>
    %30 = arith.extf %29 : vector<1x32xbf16> to vector<1x32xf32>
    %31 = vector.broadcast %28 : vector<1x32xf32> to vector<2x32xf32>
    %32 = arith.mulf %17, %31 : vector<2x32xf32>
    %cst_22 = arith.constant dense<0.000000e+00> : vector<2xf32>
    %33 = vector.multi_reduction <add>, %32, %cst_22 [1] : vector<2x32xf32> to vector<2xf32>
    %34 = vector.shape_cast %33 : vector<2xf32> to vector<2x1xf32>
    %c0_23 = arith.constant 0 : index
    %c0_24 = arith.constant 0 : index
    %35 = vector.load %arg10[%c0_23, %c0_24] : memref<1x2xf32, #tpu.memory_space<vmem>>, vector<1x1xf32>
    %36 = vector.broadcast %35 : vector<1x1xf32> to vector<2x1xf32>
    %37 = arith.addf %34, %36 : vector<2x1xf32>
    %38 = vector.broadcast %30 : vector<1x32xf32> to vector<2x32xf32>
    %39 = arith.mulf %26, %38 : vector<2x32xf32>
    %cst_25 = arith.constant dense<0.000000e+00> : vector<2xf32>
    %40 = vector.multi_reduction <add>, %39, %cst_25 [1] : vector<2x32xf32> to vector<2xf32>
    %41 = vector.shape_cast %40 : vector<2xf32> to vector<2x1xf32>
    %c0_26 = arith.constant 0 : index
    %c1 = arith.constant 1 : index
    %42 = vector.load %arg10[%c0_26, %c1] : memref<1x2xf32, #tpu.memory_space<vmem>>, vector<1x1xf32>
    %43 = vector.broadcast %42 : vector<1x1xf32> to vector<2x1xf32>
    %44 = arith.addf %41, %43 : vector<2x1xf32>
    %c0_27 = arith.constant 0 : index
    %c0_28 = arith.constant 0 : index
    %45 = vector.load %arg11[%c0_27, %c0_28] : memref<2x2xf32, #tpu.memory_space<vmem>>, vector<2x1xf32>
    tpu.vector_store %arg11[%c0_27, %c0_28], %37 {strides = array<i32>} : memref<2x2xf32, #tpu.memory_space<vmem>>, vector<2x1xf32>,
    %c0_29 = arith.constant 0 : index
    %c1_30 = arith.constant 1 : index
    %46 = vector.load %arg11[%c0_29, %c1_30] : memref<2x2xf32, #tpu.memory_space<vmem>>, vector<2x1xf32>
    tpu.vector_store %arg11[%c0_29, %c1_30], %44 {strides = array<i32>} : memref<2x2xf32, #tpu.memory_space<vmem>>, vector<2x1xf32>,
    return
  }
  func.func @transform_0(%arg0: i32) -> (i32, i32) {
    %c0_i32 = arith.constant 0 : i32
    %c0_i32_0 = arith.constant 0 : i32
    return %arg0, %c0_i32 : i32, i32
  }
  func.func @transform_1(%arg0: i32) -> (i32, i32) {
    %c0_i32 = arith.constant 0 : i32
    %c0_i32_0 = arith.constant 0 : i32
    %c0_i32_1 = arith.constant 0 : i32
    return %c0_i32, %c0_i32_0 : i32, i32
  }
  func.func @transform_2(%arg0: i32) -> (i32, i32) {
    %c0_i32 = arith.constant 0 : i32
    %c0_i32_0 = arith.constant 0 : i32
    %c0_i32_1 = arith.constant 0 : i32
    return %c0_i32, %c0_i32_0 : i32, i32
  }
  func.func @transform_3(%arg0: i32) -> (i32, i32) {
    %c0_i32 = arith.constant 0 : i32
    %c0_i32_0 = arith.constant 0 : i32
    %c0_i32_1 = arith.constant 0 : i32
    return %c0_i32, %c0_i32_0 : i32, i32
  }
  func.func @transform_4(%arg0: i32) -> (i32, i32) {
    %c0_i32 = arith.constant 0 : i32
    %c0_i32_0 = arith.constant 0 : i32
    %c0_i32_1 = arith.constant 0 : i32
    return %c0_i32, %c0_i32_0 : i32, i32
  }
  func.func @transform_5(%arg0: i32) -> (i32, i32) {
    %c0_i32 = arith.constant 0 : i32
    %c0_i32_0 = arith.constant 0 : i32
    %c0_i32_1 = arith.constant 0 : i32
    return %c0_i32, %c0_i32_0 : i32, i32
  }
  func.func @transform_6(%arg0: i32) -> (i32, i32) {
    %c0_i32 = arith.constant 0 : i32
    %c0_i32_0 = arith.constant 0 : i32
    %c0_i32_1 = arith.constant 0 : i32
    return %c0_i32, %c0_i32_0 : i32, i32
  }
  func.func @transform_7(%arg0: i32) -> (i32, i32) {
    %c0_i32 = arith.constant 0 : i32
    %c0_i32_0 = arith.constant 0 : i32
    %c0_i32_1 = arith.constant 0 : i32
    return %c0_i32, %c0_i32_0 : i32, i32
  }
  func.func @transform_8(%arg0: i32) -> (i32, i32) {
    %c0_i32 = arith.constant 0 : i32
    %c0_i32_0 = arith.constant 0 : i32
    %c0_i32_1 = arith.constant 0 : i32
    return %c0_i32, %c0_i32_0 : i32, i32
  }
  func.func @transform_9(%arg0: i32) -> (i32, i32) {
    %c0_i32 = arith.constant 0 : i32
    %c0_i32_0 = arith.constant 0 : i32
    %c0_i32_1 = arith.constant 0 : i32
    return %c0_i32, %c0_i32_0 : i32, i32
  }
  func.func @transform_10(%arg0: i32) -> (i32, i32) {
    %c0_i32 = arith.constant 0 : i32
    %c0_i32_0 = arith.constant 0 : i32
    return %arg0, %c0_i32 : i32, i32
  }
}

</mosaic_0001>

<llo_original>
// kernel: tpu_custom_call.1
$region0: #{tpu_custom_call.1}
  #allocation0 [shape = 'u32[]', space=smem, size = 0x4, offset = 0x4, fixed_abs, tag = 'smem constant byte address 0x4 - core index']
  #allocation1 [shape = 'u32[144,128]{1,0:T(1,128)}', space=vmem, size = 0x12000, scoped, tag = 'internal scratch']
  %s0 = inlined_call_operand.hbm [shape: f32[2,12], index: 0, kind: input, shape index: {}]
  %s1 = inlined_call_operand.hbm [shape: bf16[12,64], index: 1, kind: input, shape index: {}]
  %s2 = inlined_call_operand.vmem [shape: f32[1,64], index: 2, kind: input, shape index: {}]
  %s3 = inlined_call_operand.hbm [shape: bf16[32,32], index: 3, kind: input, shape index: {}]
  %s4 = inlined_call_operand.vmem [shape: f32[1,32], index: 4, kind: input, shape index: {}]
  %s5 = inlined_call_operand.vmem [shape: bf16[32,32], index: 5, kind: input, shape index: {}]
  %s6 = inlined_call_operand.vmem [shape: f32[1,32], index: 6, kind: input, shape index: {}]
  %s7 = inlined_call_operand.vmem [shape: bf16[1,32], index: 7, kind: input, shape index: {}]
  %s8 = inlined_call_operand.vmem [shape: bf16[1,32], index: 8, kind: input, shape index: {}]
  %s9 = inlined_call_operand.vmem [shape: f32[1,2], index: 9, kind: input, shape index: {}]
  %s10 = inlined_call_operand.hbm [shape: f32[2,2], index: 10, kind: output, shape index: {}]
  %s11 = sld [smem:[#allocation0]]
  $region62: #{tpu_custom_call.1} parent=0
    _
  %s13 = ssub.s32 1, %s11
  %s14 = scalar_select 0, %s13, %s11
  $region1: #{tpu_custom_call.1} parent=0
    #allocation2 [shape = 'u8[1024]{0}', space=vmem, size = 0x400, scoped, tag = 'input window, operand 0, single buffered']
    #allocation3 [shape = 's32[1]{0}', space=sflag, size = 0x4, scoped, tag = 'scoped memory for tpu_custom_call.1']
    #allocation4 [shape = 's32[1]{0}', space=sflag, size = 0x4, scoped, tag = 'scoped memory for tpu_custom_call.1']
    #allocation5 [shape = 'u8[4096]{0}', space=vmem, size = 0x1000, scoped, tag = 'input window, operand 1, single buffered']
    #allocation6 [shape = 's32[1]{0}', space=sflag, size = 0x4, scoped, tag = 'scoped memory for tpu_custom_call.1']
    #allocation7 [shape = 'u8[8192]{0}', space=vmem, size = 0x2000, scoped, tag = 'input window, operand 3, single buffered']
    #allocation8 [shape = 'u8[1024]{0}', space=vmem, size = 0x400, scoped, tag = 'output window, operand 0, single buffered']
    %15 = vsyncpa [#allocation3], 0
    %16 = vsyncpa [#allocation6], 0
    %17 = vsyncpa [#allocation4], 0
    // Predicated region
    $region2: #{tpu_custom_call.1} parent=1 // pred_check
      _
    $region3: #{tpu_custom_call.1} parent=1 // pred_check_branch
      %19 = sbr.rel (0) target = $region5
    $region4: #{tpu_custom_call.1} parent=1 // pred_region
      %s21 = ssub.s32 32, 32
      %22 = vsyncadd [#allocation3], %s21
      %s24 = sshll.u32 [#allocation2], 4
      %s25 = int_to_ptr.vmem [resolvable:$true] %s24
      %27 = dma.hbm_to_vmem [thread:$0]  %s0, 32, %s25, [#allocation3]
    $region5: #{tpu_custom_call.1} parent=1 // pred_fallthru
      _
    // Predicated region
    $region6: #{tpu_custom_call.1} parent=1 // pred_check
      _
    $region7: #{tpu_custom_call.1} parent=1 // pred_check_branch
      %29 = sbr.rel (0) target = $region9
    $region8: #{tpu_custom_call.1} parent=1 // pred_region
      %s31 = ssub.s32 128, 128
      %32 = vsyncadd [#allocation6], %s31
      %s33 = sshll.u32 [#allocation5], 4
      %s34 = int_to_ptr.vmem [resolvable:$true] %s33
      %39 = dma.hbm_to_vmem [thread:$0]  %s1, 128, %s34, [#allocation6], 64, 64, 4
    $region9: #{tpu_custom_call.1} parent=1 // pred_fallthru
      _
    // Predicated region
    $region10: #{tpu_custom_call.1} parent=1 // pred_check
      _
    $region11: #{tpu_custom_call.1} parent=1 // pred_check_branch
      %41 = sbr.rel (0) target = $region13
    $region12: #{tpu_custom_call.1} parent=1 // pred_region
      _
    $region13: #{tpu_custom_call.1} parent=1 // pred_fallthru
      _
    // Predicated region
    $region14: #{tpu_custom_call.1} parent=1 // pred_check
      _
    $region15: #{tpu_custom_call.1} parent=1 // pred_check_branch
      %43 = sbr.rel (0) target = $region17
    $region16: #{tpu_custom_call.1} parent=1 // pred_region
      %s45 = ssub.s32 256, 256
      %46 = vsyncadd [#allocation6], %s45
      %s47 = sshll.u32 [#allocation7], 4
      %s48 = int_to_ptr.vmem [resolvable:$true] %s47
      %53 = dma.hbm_to_vmem [thread:$0]  %s3, 256, %s48, [#allocation6], 64, 64, 4
    $region17: #{tpu_custom_call.1} parent=1 // pred_fallthru
      _
    // Predicated region
    $region18: #{tpu_custom_call.1} parent=1 // pred_check
      _
    $region19: #{tpu_custom_call.1} parent=1 // pred_check_branch
      %55 = sbr.rel (0) target = $region21
    $region20: #{tpu_custom_call.1} parent=1 // pred_region
      _
    $region21: #{tpu_custom_call.1} parent=1 // pred_fallthru
      _
    // Predicated region
    $region22: #{tpu_custom_call.1} parent=1 // pred_check
      _
    $region23: #{tpu_custom_call.1} parent=1 // pred_check_branch
      %57 = sbr.rel (0) target = $region25
    $region24: #{tpu_custom_call.1} parent=1 // pred_region
      _
    $region25: #{tpu_custom_call.1} parent=1 // pred_fallthru
      _
    // Predicated region
    $region26: #{tpu_custom_call.1} parent=1 // pred_check
      _
    $region27: #{tpu_custom_call.1} parent=1 // pred_check_branch
      %59 = sbr.rel (0) target = $region29
    $region28: #{tpu_custom_call.1} parent=1 // pred_region
      _
    $region29: #{tpu_custom_call.1} parent=1 // pred_fallthru
      _
    // Predicated region
    $region30: #{tpu_custom_call.1} parent=1 // pred_check
      _
    $region31: #{tpu_custom_call.1} parent=1 // pred_check_branch
      %61 = sbr.rel (0) target = $region33
    $region32: #{tpu_custom_call.1} parent=1 // pred_region
      _
    $region33: #{tpu_custom_call.1} parent=1 // pred_fallthru
      _
    // Predicated region
    $region34: #{tpu_custom_call.1} parent=1 // pred_check
      _
    $region35: #{tpu_custom_call.1} parent=1 // pred_check_branch
      %63 = sbr.rel (0) target = $region37
    $region36: #{tpu_custom_call.1} parent=1 // pred_region
      _
    $region37: #{tpu_custom_call.1} parent=1 // pred_fallthru
      _
    // Predicated region
    $region38: #{tpu_custom_call.1} parent=1 // pred_check
      _
    $region39: #{tpu_custom_call.1} parent=1 // pred_check_branch
      %65 = sbr.rel (0) target = $region41
    $region40: #{tpu_custom_call.1} parent=1 // pred_region
      _
    $region41: #{tpu_custom_call.1} parent=1 // pred_fallthru
      _
    // Predicated region
    $region42: #{tpu_custom_call.1} parent=1 // pred_check
      _
    $region43: #{tpu_custom_call.1} parent=1 // pred_check_branch
      %67 = sbr.rel (0) target = $region45
    $region44: #{tpu_custom_call.1} parent=1 // pred_region
      %68 = dma.done [#allocation3], 32
    $region45: #{tpu_custom_call.1} parent=1 // pred_fallthru
      _
    // Predicated region
    $region46: #{tpu_custom_call.1} parent=1 // pred_check
      _
    $region47: #{tpu_custom_call.1} parent=1 // pred_check_branch
      %70 = sbr.rel (0) target = $region49
    $region48: #{tpu_custom_call.1} parent=1 // pred_region
      %71 = dma.done [#allocation6], 128
    $region49: #{tpu_custom_call.1} parent=1 // pred_fallthru
      _
    // Predicated region
    $region50: #{tpu_custom_call.1} parent=1 // pred_check
      _
    $region51: #{tpu_custom_call.1} parent=1 // pred_check_branch
      %73 = sbr.rel (0) target = $region53
    $region52: #{tpu_custom_call.1} parent=1 // pred_region
      %74 = dma.done [#allocation6], 256
    $region53: #{tpu_custom_call.1} parent=1 // pred_fallthru
      _
    %v76 = vld [vmem:[#allocation2] sm:$0x3]
    %v77 = vpack.c.bf16 %v76, %v76
    %v78 = vld [vmem:[#allocation5] sm:$0xf]
    %v79 = vld [vmem:[#allocation5 + $0x4] sm:$0x3]
    %v80 = vld [vmem:[%s2] sm:$0x1]
    %v82 = vlaneseq
    %v83 = vshrl.u32 %v82, 7
    %v84 = vsub.s32 0, %v83
    %v85 = vrot.slane %v80, %v84
    %v89 = vunpack.c.l.b16 %v78
    %v90 = vunpack.c.l.b16 %v79
    %v91 = vpack.c.b16 %v90, %v89
    %vm92 = vcmask 97280
    %v94 = vsel %vm92, %v77, 0
    %vm96 = vcmask 1045504
    %v98 = vsel %vm96, %v91, 0
    %100 = vmatprep.subr.bf16.mxu0 0
    %101 = vmatpush1.bf16.msra.mxu0 %v98
    %102 = vmatprep.subr.bf16.mxu0 0
    %103 = vmatpush1.bf16.msra.mxu0 0
    %104 = vmatprep.subr.bf16.mxu0 0
    %105 = vmatpush1.bf16.msra.mxu0 0
    %106 = vmatprep.subr.bf16.mxu0 0
    %107 = vmatpush1.bf16.msra.mxu0 0
    %108 = vmatprep.subr.bf16.mxu0 0
    %109 = vmatpush1.bf16.msra.mxu0 0
    %110 = vmatprep.subr.bf16.mxu0 0
    %111 = vmatpush1.bf16.msra.mxu0 0
    %112 = vmatprep.subr.bf16.mxu0 0
    %113 = vmatpush1.bf16.msra.mxu0 0
    %114 = vmatprep.subr.bf16.mxu0 0
    %115 = vmatpush1.bf16.msra.mxu0 0
    %116 = vmatprep.subr.bf16.mxu0 0
    %117 = vmatpush1.bf16.msra.mxu0 0
    %118 = vmatprep.subr.bf16.mxu0 0
    %119 = vmatpush1.bf16.msra.mxu0 0
    %120 = vmatprep.subr.bf16.mxu0 0
    %121 = vmatpush1.bf16.msra.mxu0 0
    %122 = vmatprep.subr.bf16.mxu0 0
    %123 = vmatpush1.bf16.msra.mxu0 0
    %124 = vmatprep.subr.bf16.mxu0 0
    %125 = vmatpush1.bf16.msra.mxu0 0
    %126 = vmatprep.subr.bf16.mxu0 0
    %127 = vmatpush1.bf16.msra.mxu0 0
    %128 = vmatprep.subr.bf16.mxu0 0
    %129 = vmatpush1.bf16.msra.mxu0 0
    %130 = vmatprep.subr.bf16.mxu0 0
    %131 = vmatpush1.bf16.msra.mxu0 0
    %132 = vmatprep.mubr.bf16.mxu0 0
    %133 = vmatmul.mubr.bf16.gmra.mrb[0].mxu0 %v94
    %v134 = vpop.f32.mrb[0].mxu0
    %v135 = vadd.f32 %v85, %v134
    %v136 = vpop.f32.mrb[0].mxu0
    %v137 = vpop.f32.mrb[0].mxu0
    %v138 = vpop.f32.mrb[0].mxu0
    %139 = vdwg.mxu0
    %v140 = vmax.f32 %v135, 0.0
    %v141 = vpack.c.bf16 %v140, %v140
    %v142 = vld [vmem:[#allocation7] sm:$0xf]
    %v143 = vld [vmem:[#allocation7 + $0x4] sm:$0xf]
    %v144 = vld [vmem:[#allocation7 + $0x8] sm:$0xf]
    %v145 = vld [vmem:[#allocation7 + $0xc] sm:$0xf]
    %v146 = vld [vmem:[%s4] sm:$0x1]
    %v148 = vlaneseq
    %v149 = vshrl.u32 %v148, 7
    %v150 = vsub.s32 0, %v149
    %v151 = vrot.slane %v146, %v150
    %v157 = vunpack.c.l.b16 %v142
    %v158 = vunpack.c.l.b16 %v143
    %v159 = vunpack.c.l.b16 %v144
    %v160 = vunpack.c.l.b16 %v145
    %v161 = vpack.c.b16 %v158, %v157
    %v162 = vpack.c.b16 %v160, %v159
    %vm165 = vcmask 261120
    %v167 = vsel %vm165, %v141, 0
    %169 = vmatprep.subr.bf16.mxu0 0
    %170 = vmatpush1.bf16.msra.mxu0 %v161
    %171 = vmatprep.subr.bf16.mxu0 0
    %172 = vmatpush1.bf16.msra.mxu0 %v162
    %173 = vmatprep.subr.bf16.mxu0 0
    %174 = vmatpush1.bf16.msra.mxu0 0
    %175 = vmatprep.subr.bf16.mxu0 0
    %176 = vmatpush1.bf16.msra.mxu0 0
    %177 = vmatprep.subr.bf16.mxu0 0
    %178 = vmatpush1.bf16.msra.mxu0 0
    %179 = vmatprep.subr.bf16.mxu0 0
    %180 = vmatpush1.bf16.msra.mxu0 0
    %181 = vmatprep.subr.bf16.mxu0 0
    %182 = vmatpush1.bf16.msra.mxu0 0
    %183 = vmatprep.subr.bf16.mxu0 0
    %184 = vmatpush1.bf16.msra.mxu0 0
    %185 = vmatprep.subr.bf16.mxu0 0
    %186 = vmatpush1.bf16.msra.mxu0 0
    %187 = vmatprep.subr.bf16.mxu0 0
    %188 = vmatpush1.bf16.msra.mxu0 0
    %189 = vmatprep.subr.bf16.mxu0 0
    %190 = vmatpush1.bf16.msra.mxu0 0
    %191 = vmatprep.subr.bf16.mxu0 0
    %192 = vmatpush1.bf16.msra.mxu0 0
    %193 = vmatprep.subr.bf16.mxu0 0
    %194 = vmatpush1.bf16.msra.mxu0 0
    %195 = vmatprep.subr.bf16.mxu0 0
    %196 = vmatpush1.bf16.msra.mxu0 0
    %197 = vmatprep.subr.bf16.mxu0 0
    %198 = vmatpush1.bf16.msra.mxu0 0
    %199 = vmatprep.subr.bf16.mxu0 0
    %200 = vmatpush1.bf16.msra.mxu0 0
    %201 = vmatprep.mubr.bf16.mxu0 0
    %202 = vmatmul.mubr.bf16.gmra.mrb[0].mxu0 %v167
    %v203 = vpop.f32.mrb[0].mxu0
    %v204 = vadd.f32 %v151, %v203
    %v205 = vpop.f32.mrb[0].mxu0
    %v206 = vpop.f32.mrb[0].mxu0
    %v207 = vpop.f32.mrb[0].mxu0
    %208 = vdwg.mxu0
    %v209 = vmax.f32 %v204, 0.0
    %v210 = vld [vmem:[%s5] sm:$0xf]
    %v211 = vld [vmem:[%s5 + $0x4] sm:$0xf]
    %v212 = vld [vmem:[%s5 + $0x8] sm:$0xf]
    %v213 = vld [vmem:[%s5 + $0xc] sm:$0xf]
    %v214 = vld [vmem:[%s6] sm:$0x1]
    %v216 = vlaneseq
    %v217 = vshrl.u32 %v216, 7
    %v218 = vsub.s32 0, %v217
    %v219 = vrot.slane %v214, %v218
    %222 = vrot.lane.b32.xlu0 %v141, 96
    %v223 = vpop.permute.xlu0 %222
    %v228 = vunpack.c.l.b16 %v210
    %v229 = vunpack.c.l.b16 %v211
    %v230 = vunpack.c.l.b16 %v212
    %v231 = vunpack.c.l.b16 %v213
    %v232 = vpack.c.b16 %v229, %v228
    %v233 = vpack.c.b16 %v231, %v230
    %v237 = vsel %vm165, %v223, 0
    %239 = vmatprep.subr.bf16.mxu0 0
    %240 = vmatpush1.bf16.msra.mxu0 %v232
    %241 = vmatprep.subr.bf16.mxu0 0
    %242 = vmatpush1.bf16.msra.mxu0 %v233
    %243 = vmatprep.subr.bf16.mxu0 0
    %244 = vmatpush1.bf16.msra.mxu0 0
    %245 = vmatprep.subr.bf16.mxu0 0
    %246 = vmatpush1.bf16.msra.mxu0 0
    %247 = vmatprep.subr.bf16.mxu0 0
    %248 = vmatpush1.bf16.msra.mxu0 0
    %249 = vmatprep.subr.bf16.mxu0 0
    %250 = vmatpush1.bf16.msra.mxu0 0
    %251 = vmatprep.subr.bf16.mxu0 0
    %252 = vmatpush1.bf16.msra.mxu0 0
    %253 = vmatprep.subr.bf16.mxu0 0
    %254 = vmatpush1.bf16.msra.mxu0 0
    %255 = vmatprep.subr.bf16.mxu0 0
    %256 = vmatpush1.bf16.msra.mxu0 0
    %257 = vmatprep.subr.bf16.mxu0 0
    %258 = vmatpush1.bf16.msra.mxu0 0
    %259 = vmatprep.subr.bf16.mxu0 0
    %260 = vmatpush1.bf16.msra.mxu0 0
    %261 = vmatprep.subr.bf16.mxu0 0
    %262 = vmatpush1.bf16.msra.mxu0 0
    %263 = vmatprep.subr.bf16.mxu0 0
    %264 = vmatpush1.bf16.msra.mxu0 0
    %265 = vmatprep.subr.bf16.mxu0 0
    %266 = vmatpush1.bf16.msra.mxu0 0
    %267 = vmatprep.subr.bf16.mxu0 0
    %268 = vmatpush1.bf16.msra.mxu0 0
    %269 = vmatprep.subr.bf16.mxu0 0
    %270 = vmatpush1.bf16.msra.mxu0 0
    %271 = vmatprep.mubr.bf16.mxu0 0
    %272 = vmatmul.mubr.bf16.gmra.mrb[0].mxu0 %v237
    %v273 = vpop.f32.mrb[0].mxu0
    %v274 = vadd.f32 %v219, %v273
    %v275 = vpop.f32.mrb[0].mxu0
    %v276 = vpop.f32.mrb[0].mxu0
    %v277 = vpop.f32.mrb[0].mxu0
    %278 = vdwg.mxu0
    %v279 = vmax.f32 %v274, 0.0
    %v280 = vld [vmem:[%s7] sm:$0x1]
    %v281 = vunpack.c.l.bf16 %v280
    %v282 = vld [vmem:[%s8] sm:$0x1]
    %v283 = vunpack.c.l.bf16 %v282
    %v284 = vlaneseq
    %v285 = vshrl.u32 %v284, 7
    %v286 = vsub.s32 0, %v285
    %v287 = vrot.slane %v281, %v286
    %v288 = vmul.f32 %v209, %v287
    %vm289 = vcmask 254976
    %v290 = vsel %vm289, %v288, 0.0
    %291 = vadd.xlane.f32.xlu0 %v290
    %v292 = vpop.xlane.xlu0 %291
    %v293 = vld [vmem:[%s9] sm:$0x1]
    %v295 = vlaneseq
    %v296 = vshrl.u32 %v295, 7
    %v297 = vsub.s32 0, %v296
    %v298 = vrot.slane %v293, %v297
    %v300 = vadd.f32 %v292, %v298
    %v301 = vlaneseq
    %v302 = vshrl.u32 %v301, 7
    %v303 = vsub.s32 0, %v302
    %v304 = vrot.slane %v283, %v303
    %v305 = vmul.f32 %v279, %v304
    %v306 = vsel %vm289, %v305, 0.0
    %307 = vadd.xlane.f32.xlu0 %v306
    %v308 = vpop.xlane.xlu0 %307
    %v309 = vadd.f32 %v308, %v298
    %vm310 = vcmask 1024
    %311 = vst.msk [vmem:[#allocation8] sm:$0x3] %vm310, %v300
    %vm312 = vcmask 9224
    %313 = vst.msk [vmem:[#allocation8] sm:$0x3] %vm312, %v309
    // Predicated region
    $region54: #{tpu_custom_call.1} parent=1 // pred_check
      _
    $region55: #{tpu_custom_call.1} parent=1 // pred_check_branch
      %315 = sbr.rel (0) target = $region57
    $region56: #{tpu_custom_call.1} parent=1 // pred_region
      %s317 = ssub.s32 32, 32
      %318 = vsyncadd [#allocation4], %s317
      %s320 = sshll.u32 [#allocation8], 4
      %s321 = int_to_ptr.vmem [resolvable:$true] %s320
      %323 = dma.vmem_to_hbm [thread:$0]  %s321, 32, %s10, [#allocation4]
    $region57: #{tpu_custom_call.1} parent=1 // pred_fallthru
      _
    // Predicated region
    $region58: #{tpu_custom_call.1} parent=1 // pred_check
      _
    $region59: #{tpu_custom_call.1} parent=1 // pred_check_branch
      %325 = sbr.rel (0) target = $region61
    $region60: #{tpu_custom_call.1} parent=1 // pred_region
      %326 = dma.done [#allocation4], 32
    $region61: #{tpu_custom_call.1} parent=1 // pred_fallthru
      _
    %327 = vsyncpa [#allocation3], 1
    %328 = vsyncpa [#allocation6], 1
    %329 = vsyncpa [#allocation4], 1

</llo_original>
